<compile_context>
chip_gen: v5e
topology: v5e:2x2
jax: 0.10.0
libtpu: 0.0.40
codegen_flags: <defaults>
</compile_context>

<pallas_src>
import functools

import jax
import jax.numpy as jnp
import numpy as np
from jax.experimental import pallas as pl
from jax.experimental.pallas import tpu as pltpu


# ----------------------------- Pallas kernel ------------------------------ #
def _bottleneck_kernel(xm_ref, xu_ref, xd_ref, w1_ref, b1_ref, w2_ref, b2_ref,
                       w3_ref, b3_ref, *rest, downsampling):
    if downsampling:
        wd_ref, bd_ref, o_ref = rest
    else:
        (o_ref,) = rest

    _, TH, W, C_in = xm_ref.shape            # x tile: (1, TH, W, C_in)
    P = w1_ref.shape[1]
    C_out = w3_ref.shape[1]
    TM = TH * W
    f32 = jnp.float32
    bf16 = jnp.bfloat16

    t = pl.program_id(1)
    last = pl.num_programs(1) - 1

    xm = xm_ref[0]                            # (TH, W, C_in) bf16
    xm_flat = xm.reshape(TM, C_in)            # free when W % 8 == 0
    w1 = w1_ref[...]
    b1 = b1_ref[...]

    # --- 1x1 conv + BN + ReLU on the tile rows (f32 accumulation) ---------- #
    h1m = jnp.dot(xm_flat, w1, preferred_element_type=f32)
    h1m = jnp.maximum(h1m + b1, 0.0).reshape(TH, W, P)

    # Halo rows (row above / below the tile).  Re-computing the 1x1 conv on a
    # single row is negligible; rows outside the image are zeroed, which is
    # exactly the 3x3 conv's zero padding (padding applies to h1, not x).
    def halo_row(row_ref, valid):
        r = jnp.dot(row_ref[0, 0], w1, preferred_element_type=f32)   # (W, P)
        r = jnp.maximum(r + b1, 0.0)
        r = jnp.where(valid, r, 0.0)
        return r.reshape(1, W, P)

    h1u = halo_row(xu_ref, t > 0)
    h1d = halo_row(xd_ref, t < last)
    h1e = jnp.concatenate([h1u, h1m, h1d], axis=0)      # (TH+2, W, P) f32

    # --- 3x3 conv (stride=1, pad=1) as ONE K=9P matmul ---------------------- #
    # dj (W-direction) neighbours via XLU roll + a (1, W, 1) column mask.
    col = jax.lax.broadcasted_iota(jnp.int32, (1, W, 1), 1)
    left = jnp.where(col == 0, 0.0, pltpu.roll(h1e, 1, 1))          # h1[h, w-1]
    right = jnp.where(col == W - 1, 0.0, pltpu.roll(h1e, W - 1, 1))  # h1[h, w+1]

    # Channel order of the fused contraction axis: (di, dj, c_in), matching
    # w2 reshaped to (9P, P).  Single bf16 cast of the halo slab.
    s3 = jnp.concatenate([left, h1e, right], axis=-1).astype(bf16)  # (TH+2, W, 3P)
    im2col = jnp.concatenate(
        [s3[0:TH], s3[1:TH + 1], s3[2:TH + 2]], axis=-1)            # (TH, W, 9P)
    im2col = im2col.reshape(TM, 9 * P)

    h2 = jnp.dot(im2col, w2_ref[...], preferred_element_type=f32)
    h2 = jnp.maximum(h2 + b2_ref[...], 0.0).astype(bf16)            # (TM, P)

    # --- 1x1 conv + BN ------------------------------------------------------ #
    h3 = jnp.dot(h2, w3_ref[...], preferred_element_type=f32) + b3_ref[...]

    # --- residual (computed late to keep its live range short) + ReLU ------- #
    if downsampling:
        res = jnp.dot(xm_flat, wd_ref[...],
                      preferred_element_type=f32) + bd_ref[...]
        h3 = h3 + res
    else:
        h3 = h3 + xm_flat.astype(f32)        # identity path: C_in == C_out

    out = jnp.maximum(h3, 0.0)
    o_ref[0] = out.reshape(TH, W, C_out).astype(o_ref.dtype)        # bf16 store


# ----------------------- tile-size / VMEM heuristics ----------------------- #
def _estimate_tile_bytes(TH, W, C_in, P, C_out, downsampling):
    """Rough per-grid-step VMEM footprint (double-buffered I/O + temporaries)."""
    TM, TMe = TH * W, (TH + 2) * W
    b = 0
    b += 2 * TM * C_in * 2            # x tile (x2 buffers), bf16
    b += 2 * 2 * W * C_in * 2         # halo rows (x2 buffers), bf16
    b += 2 * TM * C_out * 2           # output tile (x2 buffers), bf16
    b += 3 * TMe * P * 4              # h1e + left/right temporaries, f32
    b += TMe * 3 * P * 2              # s3, bf16
    b += TM * 9 * P * 2               # im2col, bf16
    b += TM * P * (4 + 2)             # conv2 accumulator + h2
    b += 2 * TM * C_out * 4           # h3 + residual, f32
    b += 2 * 2 * (C_in * P + 9 * P * P + P * C_out
                  + (C_in * C_out if downsampling else 0))   # weights, bf16
    return b


def _pick_row_tile(H, W, C_in, P, C_out, downsampling,
                   budget_bytes=20 * 1024 * 1024):
    divisors = [d for d in range(1, H + 1) if H % d == 0]
    fitting = [d for d in divisors
               if _estimate_tile_bytes(d, W, C_in, P, C_out,
                                       downsampling) <= budget_bytes]
    if not fitting:
        return 1
    # Prefer 512-4096 spatial positions per tile: big enough to amortise the
    # per-step overhead and reach the HBM roofline, small enough that an image
    # yields several grid steps (pipelining + megacore work at N=1).
    sweet = [d for d in fitting if 512 <= d * W <= 4096]
    return max(sweet) if sweet else max(fitting)


# ------------------------------- wrapper ----------------------------------- #
def bottleneck_pallas(x, p, *, downsampling=False, row_tile=None):
    N, H, W, C_in = x.shape
    P = p["w1"].shape[1]
    C_out = p["w3"].shape[1]
    if not downsampling and C_in != C_out:
        raise ValueError("identity residual requires C_in == C_out "
                         f"(got C_in={C_in}, C_out={C_out})")

    bf, f32 = jnp.bfloat16, jnp.float32
    xb = x.astype(bf)                                 # no-op if already bf16
    w1 = p["w1"].astype(bf)
    w2 = p["w2"].astype(bf).reshape(9 * P, P)         # (di, dj, c_in) fused K
    w3 = p["w3"].astype(bf)
    b1 = p["b1"].reshape(1, P).astype(f32)
    b2 = p["b2"].reshape(1, P).astype(f32)
    b3 = p["b3"].reshape(1, C_out).astype(f32)

    if row_tile is None:
        row_tile = _pick_row_tile(H, W, C_in, P, C_out, downsampling)
    TH = int(row_tile)
    if H % TH != 0:
        raise ValueError(f"row_tile={TH} must divide H={H}")
    T = H // TH

    kernel = functools.partial(_bottleneck_kernel, downsampling=downsampling)

    def tile_map(n, t):
        return (n, t, 0, 0)

    def up_map(n, t):                                 # row above the tile
        return (n, jnp.maximum(t * TH - 1, 0), 0, 0)

    def dn_map(n, t):                                 # row below the tile
        return (n, jnp.minimum(t * TH + TH, H - 1), 0, 0)

    def const(n, t):
        return (0, 0)

    in_specs = [
        pl.BlockSpec((1, TH, W, C_in), tile_map),
        pl.BlockSpec((1, 1, W, C_in), up_map),
        pl.BlockSpec((1, 1, W, C_in), dn_map),
        pl.BlockSpec((C_in, P), const),
        pl.BlockSpec((1, P), const),
        pl.BlockSpec((9 * P, P), const),
        pl.BlockSpec((1, P), const),
        pl.BlockSpec((P, C_out), const),
        pl.BlockSpec((1, C_out), const),
    ]
    args = [xb, xb, xb, w1, b1, w2, b2, w3, b3]
    if downsampling:
        in_specs += [pl.BlockSpec((C_in, C_out), const),
                     pl.BlockSpec((1, C_out), const)]
        args += [p["wd"].astype(bf), p["bd"].reshape(1, C_out).astype(f32)]

    out = pl.pallas_call(
        kernel,
        out_shape=jax.ShapeDtypeStruct((N, H, W, C_out), bf),
        grid_spec=pltpu.PrefetchScalarGridSpec(
            num_scalar_prefetch=0,
            grid=(N, T),
            in_specs=in_specs,
            out_specs=pl.BlockSpec((1, TH, W, C_out), tile_map),
        ),
        compiler_params=pltpu.CompilerParams(
            dimension_semantics=("parallel", "parallel"),
            vmem_limit_bytes=48 * 1024 * 1024),
    )(*args)
    return out


# -------------------- deterministic parameter construction ----------------- #
def make_params(key, in_places, places, expansion, downsampling, eps=1e-5):
    c_out = places * expansion
    keys = iter(jax.random.split(key, 32))

    def nk():
        return next(keys)

    def bn_fold(c):
        gamma = 1.0 + 0.1 * jax.random.normal(nk(), (c,), jnp.float32)
        beta = 0.1 * jax.random.normal(nk(), (c,), jnp.float32)
        mean = 0.1 * jax.random.normal(nk(), (c,), jnp.float32)
        var = 1.0 + 0.1 * jnp.abs(jax.random.normal(nk(), (c,), jnp.float32))
        s = gamma / jnp.sqrt(var + eps)
        return s, beta - mean * s

    w1 = 0.3 * jax.random.normal(nk(), (in_places, places), jnp.float32)
    s1, b1 = bn_fold(places)
    w2 = 0.2 * jax.random.normal(nk(), (3, 3, places, places), jnp.float32)
    s2, b2 = bn_fold(places)
    w3 = 0.3 * jax.random.normal(nk(), (places, c_out), jnp.float32)
    s3, b3 = bn_fold(c_out)

    p = dict(w1=w1 * s1, b1=b1, w2=w2 * s2, b2=b2, w3=w3 * s3, b3=b3)
    if downsampling:
        wd = 0.3 * jax.random.normal(nk(), (in_places, c_out), jnp.float32)
        sd, bd = bn_fold(c_out)
        p.update(wd=wd * sd, bd=bd)
    return p


# ------------------------------ JAX reference ------------------------------ #
# Mirrors the kernel's numerics: bf16 matmul operands, f32 accumulation,
# bias/ReLU in f32, intermediate activations re-cast to bf16.
def ref_forward(x, p, downsampling):
    bf = jnp.bfloat16
    xb = x.astype(bf)
    h1 = jax.nn.relu(jnp.einsum("nhwc,co->nhwo", xb, p["w1"].astype(bf),
                                preferred_element_type=jnp.float32) + p["b1"])
    h1 = h1.astype(bf)
    h2 = jax.lax.conv_general_dilated(
        h1, p["w2"].astype(bf), window_strides=(1, 1), padding=((1, 1), (1, 1)),
        dimension_numbers=("NHWC", "HWIO", "NHWC"),
        preferred_element_type=jnp.float32)
    h2 = jax.nn.relu(h2 + p["b2"]).astype(bf)
    h3 = jnp.einsum("nhwc,co->nhwo", h2, p["w3"].astype(bf),
                    preferred_element_type=jnp.float32) + p["b3"]
    if downsampling:
        res = jnp.einsum("nhwc,co->nhwo", xb, p["wd"].astype(bf),
                         preferred_element_type=jnp.float32) + p["bd"]
    else:
        res = xb.astype(jnp.float32)
    return jax.nn.relu(h3 + res)


# ---------------------------------- main ----------------------------------- #
if __name__ == "__main__":
    key = jax.random.PRNGKey(0)
    configs = [
        # identity residual requires in_places == places * expansion.
        # row_tile=4 -> 4 row tiles per image: exercises top/bottom edge halos
        # and interior tile-to-tile halos.
        dict(in_places=32, places=8, expansion=4, downsampling=False,
             N=2, H=16, W=8, row_tile=4),
        # downsample path, automatic row-tile selection (single tile here).
        dict(in_places=16, places=8, expansion=4, downsampling=True,
             N=2, H=8, W=8, row_tile=None),
    ]
    for cfg in configs:
        key, kx, kp = jax.random.split(key, 3)
        x = jax.random.normal(kx, (cfg["N"], cfg["H"], cfg["W"], cfg["in_places"]),
                              jnp.float32)
        params = make_params(kp, cfg["in_places"], cfg["places"],
                             cfg["expansion"], cfg["downsampling"])
        out = bottleneck_pallas(x, params, downsampling=cfg["downsampling"],
                                row_tile=cfg["row_tile"])
        out = jax.block_until_ready(out)
        ref = ref_forward(x, params, cfg["downsampling"])
        np.testing.assert_allclose(np.asarray(out.astype(jnp.float32)),
                                   np.asarray(ref), rtol=2e-2, atol=2e-2)
    print("KERNEL_OK")
</pallas_src>

<mosaic_0001>
module attributes {stable_mosaic.version = 11 : i64} {
  func.func @_bottleneck_kernel(%arg0: i32, %arg1: i32, %arg2: memref<1x4x8x32xbf16, #tpu.memory_space<vmem>>, %arg3: memref<1x1x8x32xbf16, #tpu.memory_space<vmem>>, %arg4: memref<1x1x8x32xbf16, #tpu.memory_space<vmem>>, %arg5: memref<32x8xbf16, #tpu.memory_space<vmem>>, %arg6: memref<1x8xf32, #tpu.memory_space<vmem>>, %arg7: memref<72x8xbf16, #tpu.memory_space<vmem>>, %arg8: memref<1x8xf32, #tpu.memory_space<vmem>>, %arg9: memref<8x32xbf16, #tpu.memory_space<vmem>>, %arg10: memref<1x32xf32, #tpu.memory_space<vmem>>, %arg11: memref<1x4x8x32xbf16, #tpu.memory_space<vmem>>) attributes {dimension_semantics = [#tpu.dimension_semantics<parallel>, #tpu.dimension_semantics<parallel>], iteration_bounds = array<i64: 2, 4>, scalar_prefetch = 0 : i64, scratch_operands = 0 : i64, tpu.core_type = #tpu.core_type<tc>, window_params = [{transform_indices = @transform_0, window_bounds = array<i64: 1, 4, 8, 32>}, {transform_indices = @transform_1, window_bounds = array<i64: 1, 1, 8, 32>}, {transform_indices = @transform_2, window_bounds = array<i64: 1, 1, 8, 32>}, {pipeline_mode = #tpu.pipeline_mode<synchronous>, transform_indices = @transform_3, window_bounds = array<i64: 32, 8>}, {pipeline_mode = #tpu.pipeline_mode<synchronous>, transform_indices = @transform_4, window_bounds = array<i64: 1, 8>}, {pipeline_mode = #tpu.pipeline_mode<synchronous>, transform_indices = @transform_5, window_bounds = array<i64: 72, 8>}, {pipeline_mode = #tpu.pipeline_mode<synchronous>, transform_indices = @transform_6, window_bounds = array<i64: 1, 8>}, {pipeline_mode = #tpu.pipeline_mode<synchronous>, transform_indices = @transform_7, window_bounds = array<i64: 8, 32>}, {pipeline_mode = #tpu.pipeline_mode<synchronous>, transform_indices = @transform_8, window_bounds = array<i64: 1, 32>}, {transform_indices = @transform_9, window_bounds = array<i64: 1, 4, 8, 32>}]} {
    %c0 = arith.constant 0 : index
    %c0_0 = arith.constant 0 : index
    %c0_1 = arith.constant 0 : index
    %c0_2 = arith.constant 0 : index
    %0 = vector.load %arg2[%c0, %c0_0, %c0_1, %c0_2] : memref<1x4x8x32xbf16, #tpu.memory_space<vmem>>, vector<1x4x8x32xbf16>
    %1 = vector.shape_cast %0 : vector<1x4x8x32xbf16> to vector<4x8x32xbf16>
    %2 = vector.shape_cast %1 : vector<4x8x32xbf16> to vector<32x32xbf16>
    %c0_3 = arith.constant 0 : index
    %c0_4 = arith.constant 0 : index
    %3 = vector.load %arg5[%c0_3, %c0_4] : memref<32x8xbf16, #tpu.memory_space<vmem>>, vector<32x8xbf16>
    %c0_5 = arith.constant 0 : index
    %c0_6 = arith.constant 0 : index
    %4 = vector.load %arg6[%c0_5, %c0_6] : memref<1x8xf32, #tpu.memory_space<vmem>>, vector<1x8xf32>
    %cst = arith.constant dense<0.000000e+00> : vector<32x8xf32>
    %5 = tpu.matmul %2, %3, %cst {dimension_numbers = #tpu.dot_dimension_numbers<[1], [0], [0], [1], [0, 0, 1, 1], [], []>} : vector<32x32xbf16>, vector<32x8xbf16>, vector<32x8xf32> -> vector<32x8xf32>
    %6 = vector.broadcast %4 : vector<1x8xf32> to vector<32x8xf32>
    %7 = arith.addf %5, %6 : vector<32x8xf32>
    %cst_7 = arith.constant 0.000000e+00 : f32
    %8 = vector.broadcast %cst_7 : f32 to vector<32x8xf32>
    %9 = arith.maximumf %7, %8 : vector<32x8xf32>
    %10 = vector.shape_cast %9 : vector<32x8xf32> to vector<4x8x8xf32>
    %c0_i32 = arith.constant 0 : i32
    %11 = arith.cmpi sgt, %arg1, %c0_i32 : i32
    %c0_8 = arith.constant 0 : index
    %c0_9 = arith.constant 0 : index
    %c0_10 = arith.constant 0 : index
    %c0_11 = arith.constant 0 : index
    %12 = vector.load %arg3[%c0_8, %c0_9, %c0_10, %c0_11] : memref<1x1x8x32xbf16, #tpu.memory_space<vmem>>, vector<1x1x8x32xbf16>
    %13 = vector.shape_cast %12 : vector<1x1x8x32xbf16> to vector<8x32xbf16>
    %cst_12 = arith.constant dense<0.000000e+00> : vector<8x8xf32>
    %14 = tpu.matmul %13, %3, %cst_12 {dimension_numbers = #tpu.dot_dimension_numbers<[1], [0], [0], [1], [0, 0, 1, 1], [], []>} : vector<8x32xbf16>, vector<32x8xbf16>, vector<8x8xf32> -> vector<8x8xf32>
    %15 = vector.broadcast %4 : vector<1x8xf32> to vector<8x8xf32>
    %16 = arith.addf %14, %15 : vector<8x8xf32>
    %cst_13 = arith.constant 0.000000e+00 : f32
    %17 = vector.broadcast %cst_13 : f32 to vector<8x8xf32>
    %18 = arith.maximumf %16, %17 : vector<8x8xf32>
    %cst_14 = arith.constant 0.000000e+00 : f32
    %19 = vector.broadcast %cst_14 : f32 to vector<8x8xf32>
    %20 = arith.select %11, %18, %19 : vector<8x8xf32>
    %21 = vector.shape_cast %20 : vector<8x8xf32> to vector<1x8x8xf32>
    %c3_i32 = arith.constant 3 : i32
    %22 = arith.cmpi slt, %arg1, %c3_i32 : i32
    %c0_15 = arith.constant 0 : index
    %c0_16 = arith.constant 0 : index
    %c0_17 = arith.constant 0 : index
    %c0_18 = arith.constant 0 : index
    %23 = vector.load %arg4[%c0_15, %c0_16, %c0_17, %c0_18] : memref<1x1x8x32xbf16, #tpu.memory_space<vmem>>, vector<1x1x8x32xbf16>
    %24 = vector.shape_cast %23 : vector<1x1x8x32xbf16> to vector<8x32xbf16>
    %cst_19 = arith.constant dense<0.000000e+00> : vector<8x8xf32>
    %25 = tpu.matmul %24, %3, %cst_19 {dimension_numbers = #tpu.dot_dimension_numbers<[1], [0], [0], [1], [0, 0, 1, 1], [], []>} : vector<8x32xbf16>, vector<32x8xbf16>, vector<8x8xf32> -> vector<8x8xf32>
    %26 = vector.broadcast %4 : vector<1x8xf32> to vector<8x8xf32>
    %27 = arith.addf %25, %26 : vector<8x8xf32>
    %cst_20 = arith.constant 0.000000e+00 : f32
    %28 = vector.broadcast %cst_20 : f32 to vector<8x8xf32>
    %29 = arith.maximumf %27, %28 : vector<8x8xf32>
    %cst_21 = arith.constant 0.000000e+00 : f32
    %30 = vector.broadcast %cst_21 : f32 to vector<8x8xf32>
    %31 = arith.select %22, %29, %30 : vector<8x8xf32>
    %32 = vector.shape_cast %31 : vector<8x8xf32> to vector<1x8x8xf32>
    %33 = tpu.concatenate %21, %10, %32 in 0 : vector<1x8x8xf32>, vector<4x8x8xf32>, vector<1x8x8xf32> -> vector<6x8x8xf32>
    %34 = tpu.iota {dimensions = array<i32: 1>} : vector<1x8x1xi32>
    %c0_i32_22 = arith.constant 0 : i32
    %35 = vector.broadcast %c0_i32_22 : i32 to vector<1x8x1xi32>
    %36 = arith.cmpi eq, %34, %35 : vector<1x8x1xi32>
    %c1_i32 = arith.constant 1 : i32
    %37 = tpu.dynamic_rotate %33 by %c1_i32 dim 1 : vector<6x8x8xf32>, i32 -> vector<6x8x8xf32>
    %cst_23 = arith.constant 0.000000e+00 : f32
    %38 = vector.shape_cast %36 : vector<1x8x1xi1> to vector<1x8x1xi1>
    %39 = vector.broadcast %38 : vector<1x8x1xi1> to vector<6x8x8xi1>
    %40 = vector.broadcast %cst_23 : f32 to vector<6x8x8xf32>
    %41 = arith.select %39, %40, %37 : vector<6x8x8xi1>, vector<6x8x8xf32>
    %c7_i32 = arith.constant 7 : i32
    %42 = vector.broadcast %c7_i32 : i32 to vector<1x8x1xi32>
    %43 = arith.cmpi eq, %34, %42 : vector<1x8x1xi32>
    %c7_i32_24 = arith.constant 7 : i32
    %44 = tpu.dynamic_rotate %33 by %c7_i32_24 dim 1 : vector<6x8x8xf32>, i32 -> vector<6x8x8xf32>
    %cst_25 = arith.constant 0.000000e+00 : f32
    %45 = vector.shape_cast %43 : vector<1x8x1xi1> to vector<1x8x1xi1>
    %46 = vector.broadcast %45 : vector<1x8x1xi1> to vector<6x8x8xi1>
    %47 = vector.broadcast %cst_25 : f32 to vector<6x8x8xf32>
    %48 = arith.select %46, %47, %44 : vector<6x8x8xi1>, vector<6x8x8xf32>
    %49 = tpu.concatenate %41, %33, %48 in 2 : vector<6x8x8xf32>, vector<6x8x8xf32>, vector<6x8x8xf32> -> vector<6x8x24xf32>
    %50 = arith.truncf %49 : vector<6x8x24xf32> to vector<6x8x24xbf16>
    %51 = vector.extract_strided_slice %50 {offsets = [0, 0, 0], sizes = [4, 8, 24], strides = [1, 1, 1]} : vector<6x8x24xbf16> to vector<4x8x24xbf16>
    %52 = vector.extract_strided_slice %50 {offsets = [1, 0, 0], sizes = [4, 8, 24], strides = [1, 1, 1]} : vector<6x8x24xbf16> to vector<4x8x24xbf16>
    %53 = vector.extract_strided_slice %50 {offsets = [2, 0, 0], sizes = [4, 8, 24], strides = [1, 1, 1]} : vector<6x8x24xbf16> to vector<4x8x24xbf16>
    %54 = tpu.concatenate %51, %52, %53 in 2 : vector<4x8x24xbf16>, vector<4x8x24xbf16>, vector<4x8x24xbf16> -> vector<4x8x72xbf16>
    %55 = vector.shape_cast %54 : vector<4x8x72xbf16> to vector<32x72xbf16>
    %c0_26 = arith.constant 0 : index
    %c0_27 = arith.constant 0 : index
    %56 = vector.load %arg7[%c0_26, %c0_27] : memref<72x8xbf16, #tpu.memory_space<vmem>>, vector<72x8xbf16>
    %cst_28 = arith.constant dense<0.000000e+00> : vector<32x8xf32>
    %57 = tpu.matmul %55, %56, %cst_28 {dimension_numbers = #tpu.dot_dimension_numbers<[1], [0], [0], [1], [0, 0, 1, 1], [], []>} : vector<32x72xbf16>, vector<72x8xbf16>, vector<32x8xf32> -> vector<32x8xf32>
    %c0_29 = arith.constant 0 : index
    %c0_30 = arith.constant 0 : index
    %58 = vector.load %arg8[%c0_29, %c0_30] : memref<1x8xf32, #tpu.memory_space<vmem>>, vector<1x8xf32>
    %59 = vector.broadcast %58 : vector<1x8xf32> to vector<32x8xf32>
    %60 = arith.addf %57, %59 : vector<32x8xf32>
    %cst_31 = arith.constant 0.000000e+00 : f32
    %61 = vector.broadcast %cst_31 : f32 to vector<32x8xf32>
    %62 = arith.maximumf %60, %61 : vector<32x8xf32>
    %63 = arith.truncf %62 : vector<32x8xf32> to vector<32x8xbf16>
    %c0_32 = arith.constant 0 : index
    %c0_33 = arith.constant 0 : index
    %64 = vector.load %arg9[%c0_32, %c0_33] : memref<8x32xbf16, #tpu.memory_space<vmem>>, vector<8x32xbf16>
    %cst_34 = arith.constant dense<0.000000e+00> : vector<32x32xf32>
    %65 = tpu.matmul %63, %64, %cst_34 {dimension_numbers = #tpu.dot_dimension_numbers<[1], [0], [0], [1], [0, 0, 1, 1], [], []>} : vector<32x8xbf16>, vector<8x32xbf16>, vector<32x32xf32> -> vector<32x32xf32>
    %c0_35 = arith.constant 0 : index
    %c0_36 = arith.constant 0 : index
    %66 = vector.load %arg10[%c0_35, %c0_36] : memref<1x32xf32, #tpu.memory_space<vmem>>, vector<1x32xf32>
    %67 = vector.broadcast %66 : vector<1x32xf32> to vector<32x32xf32>
    %68 = arith.addf %65, %67 : vector<32x32xf32>
    %69 = arith.extf %2 : vector<32x32xbf16> to vector<32x32xf32>
    %70 = arith.addf %68, %69 : vector<32x32xf32>
    %cst_37 = arith.constant 0.000000e+00 : f32
    %71 = vector.broadcast %cst_37 : f32 to vector<32x32xf32>
    %72 = arith.maximumf %70, %71 : vector<32x32xf32>
    %73 = vector.shape_cast %72 : vector<32x32xf32> to vector<4x8x32xf32>
    %74 = arith.truncf %73 : vector<4x8x32xf32> to vector<4x8x32xbf16>
    %c0_38 = arith.constant 0 : index
    %c0_39 = arith.constant 0 : index
    %c0_40 = arith.constant 0 : index
    %c0_41 = arith.constant 0 : index
    %75 = vector.load %arg11[%c0_38, %c0_39, %c0_40, %c0_41] : memref<1x4x8x32xbf16, #tpu.memory_space<vmem>>, vector<1x4x8x32xbf16>
    %76 = vector.shape_cast %75 : vector<1x4x8x32xbf16> to vector<4x8x32xbf16>
    %77 = vector.shape_cast %74 : vector<4x8x32xbf16> to vector<1x4x8x32xbf16>
    tpu.vector_store %arg11[%c0_38, %c0_39, %c0_40, %c0_41], %77 {strides = array<i32>} : memref<1x4x8x32xbf16, #tpu.memory_space<vmem>>, vector<1x4x8x32xbf16>,
    return
  }
  func.func @transform_0(%arg0: i32, %arg1: i32) -> (i32, i32, i32, i32) {
    %c0_i32 = arith.constant 0 : i32
    %c0_i32_0 = arith.constant 0 : i32
    %c0_i32_1 = arith.constant 0 : i32
    return %arg0, %arg1, %c0_i32, %c0_i32_0 : i32, i32, i32, i32
  }
  func.func @transform_1(%arg0: i32, %arg1: i32) -> (i32, i32, i32, i32) {
    %c4_i32 = arith.constant 4 : i32
    %0 = arith.muli %arg1, %c4_i32 : i32
    %c1_i32 = arith.constant 1 : i32
    %1 = arith.subi %0, %c1_i32 : i32
    %c0_i32 = arith.constant 0 : i32
    %2 = arith.maxsi %1, %c0_i32 : i32
    %c0_i32_0 = arith.constant 0 : i32
    %c0_i32_1 = arith.constant 0 : i32
    %c0_i32_2 = arith.constant 0 : i32
    return %arg0, %2, %c0_i32_0, %c0_i32_1 : i32, i32, i32, i32
  }
  func.func @transform_2(%arg0: i32, %arg1: i32) -> (i32, i32, i32, i32) {
    %c4_i32 = arith.constant 4 : i32
    %0 = arith.muli %arg1, %c4_i32 : i32
    %c4_i32_0 = arith.constant 4 : i32
    %1 = arith.addi %0, %c4_i32_0 : i32
    %c15_i32 = arith.constant 15 : i32
    %2 = arith.minsi %1, %c15_i32 : i32
    %c0_i32 = arith.constant 0 : i32
    %c0_i32_1 = arith.constant 0 : i32
    %c0_i32_2 = arith.constant 0 : i32
    return %arg0, %2, %c0_i32, %c0_i32_1 : i32, i32, i32, i32
  }
  func.func @transform_3(%arg0: i32, %arg1: i32) -> (i32, i32) {
    %c0_i32 = arith.constant 0 : i32
    %c0_i32_0 = arith.constant 0 : i32
    %c0_i32_1 = arith.constant 0 : i32
    return %c0_i32, %c0_i32_0 : i32, i32
  }
  func.func @transform_4(%arg0: i32, %arg1: i32) -> (i32, i32) {
    %c0_i32 = arith.constant 0 : i32
    %c0_i32_0 = arith.constant 0 : i32
    %c0_i32_1 = arith.constant 0 : i32
    return %c0_i32, %c0_i32_0 : i32, i32
  }
  func.func @transform_5(%arg0: i32, %arg1: i32) -> (i32, i32) {
    %c0_i32 = arith.constant 0 : i32
    %c0_i32_0 = arith.constant 0 : i32
    %c0_i32_1 = arith.constant 0 : i32
    return %c0_i32, %c0_i32_0 : i32, i32
  }
  func.func @transform_6(%arg0: i32, %arg1: i32) -> (i32, i32) {
    %c0_i32 = arith.constant 0 : i32
    %c0_i32_0 = arith.constant 0 : i32
    %c0_i32_1 = arith.constant 0 : i32
    return %c0_i32, %c0_i32_0 : i32, i32
  }
  func.func @transform_7(%arg0: i32, %arg1: i32) -> (i32, i32) {
    %c0_i32 = arith.constant 0 : i32
    %c0_i32_0 = arith.constant 0 : i32
    %c0_i32_1 = arith.constant 0 : i32
    return %c0_i32, %c0_i32_0 : i32, i32
  }
  func.func @transform_8(%arg0: i32, %arg1: i32) -> (i32, i32) {
    %c0_i32 = arith.constant 0 : i32
    %c0_i32_0 = arith.constant 0 : i32
    %c0_i32_1 = arith.constant 0 : i32
    return %c0_i32, %c0_i32_0 : i32, i32
  }
  func.func @transform_9(%arg0: i32, %arg1: i32) -> (i32, i32, i32, i32) {
    %c0_i32 = arith.constant 0 : i32
    %c0_i32_0 = arith.constant 0 : i32
    %c0_i32_1 = arith.constant 0 : i32
    return %arg0, %arg1, %c0_i32, %c0_i32_0 : i32, i32, i32, i32
  }
}

</mosaic_0001>

<llo_original>
// kernel: tpu_custom_call.1
$region0: #{tpu_custom_call.1}
  #allocation0 [shape = 'u32[]', space=smem, size = 0x4, offset = 0x4, fixed_abs, tag = 'smem constant byte address 0x4 - core index']
  #allocation1 [shape = 'u32[72,128]{1,0:T(1,128)}', space=vmem, size = 0x9000, scoped, tag = 'internal scratch']
  %s0 = inlined_call_operand.hbm [shape: bf16[2,16,8,32], index: 0, kind: input, shape index: {}]
  %s1 = inlined_call_operand.hbm [shape: bf16[2,16,8,32], index: 1, kind: input, shape index: {}]
  %s2 = inlined_call_operand.hbm [shape: bf16[2,16,8,32], index: 2, kind: input, shape index: {}]
  %s3 = inlined_call_operand.vmem [shape: bf16[32,8], index: 3, kind: input, shape index: {}]
  %s4 = inlined_call_operand.vmem [shape: f32[1,8], index: 4, kind: input, shape index: {}]
  %s5 = inlined_call_operand.vmem [shape: bf16[72,8], index: 5, kind: input, shape index: {}]
  %s6 = inlined_call_operand.vmem [shape: f32[1,8], index: 6, kind: input, shape index: {}]
  %s7 = inlined_call_operand.vmem [shape: bf16[8,32], index: 7, kind: input, shape index: {}]
  %s8 = inlined_call_operand.vmem [shape: f32[1,32], index: 8, kind: input, shape index: {}]
  %s9 = inlined_call_operand.hbm [shape: bf16[2,16,8,32], index: 9, kind: output, shape index: {}]
  %s10 = sld [smem:[#allocation0]]
  $region81: #{tpu_custom_call.1} parent=0
    _
  %s12 = ssub.s32 1, %s10
  %s13 = scalar_select 0, %s12, %s10
  $region1: #{tpu_custom_call.1} parent=0
    #allocation2 [shape = 'u8[16384]{0}', space=vmem, size = 0x4000, scoped, tag = 'input window, operand 0']
    #allocation3 [shape = 's32[2]{0}', space=sflag, size = 0x8, scoped, tag = 'scoped memory for tpu_custom_call.1']
    #allocation4 [shape = 's32[2]{0}', space=sflag, size = 0x8, scoped, tag = 'scoped memory for tpu_custom_call.1']
    #allocation5 [shape = 'u8[4096]{0}', space=vmem, size = 0x1000, scoped, tag = 'input window, operand 1']
    #allocation6 [shape = 's32[2]{0}', space=sflag, size = 0x8, scoped, tag = 'scoped memory for tpu_custom_call.1']
    #allocation7 [shape = 'u8[4096]{0}', space=vmem, size = 0x1000, scoped, tag = 'input window, operand 2']
    #allocation8 [shape = 'u8[16384]{0}', space=vmem, size = 0x4000, scoped, tag = 'output window, operand 0']
    %14 = vsyncpa [#allocation3], 0
    %s15 = scalar_lea.sflag [#allocation3], 1
    %16 = vsyncpa %s15, 0
    %17 = vsyncpa [#allocation6], 0
    %s18 = scalar_lea.sflag [#allocation6], 1
    %19 = vsyncpa %s18, 0
    %20 = vsyncpa [#allocation4], 0
    %s21 = scalar_lea.sflag [#allocation4], 1
    %22 = vsyncpa %s21, 0
    loop: start=0, step=1, limit=10
    $region2: #{tpu_custom_call.1} parent=1 // loop_pre_header
      _
    $region3: #{tpu_custom_call.1} parent=1 // loop_header
      %s24 = sphi 0, %s28
      %p25 = scmp.ge.s32.totalorder %s24, 10
      %s31 = sphi 0, %s43
      %s32 = sphi 0, %s39
      %s33 = sphi 0, %s31
      %s34 = sphi 0, %s32
      %s35 = sphi 0, %s33
      %s36 = sphi 0, %s34
      %s48 = sphi 0, %s50
      %s51 = sphi 0, %s48
      %s52 = sphi 0, %s51
      %s68 = sphi 0, %s52
      %s84 = sphi 0, %s86
      %s87 = sphi 0, %s84
      %s88 = sphi 0, %s87
      %s104 = sphi 0, %s88
      %s120 = sphi 0, %s122
      %s123 = sphi 0, %s120
      %s124 = sphi 0, %s123
      %s140 = sphi 0, %s124
      %s144 = sphi 0, %s144
      %s146 = sphi 0, %s144
      %s147 = sphi 0, %s146
      %s161 = sphi 0, %s147
      %s165 = sphi 0, %s165
      %s167 = sphi 0, %s165
      %s168 = sphi 0, %s167
      %s182 = sphi 0, %s168
      %s186 = sphi 0, %s186
      %s188 = sphi 0, %s186
      %s189 = sphi 0, %s188
      %s203 = sphi 0, %s189
      %s207 = sphi 0, %s207
      %s209 = sphi 0, %s207
      %s210 = sphi 0, %s209
      %s224 = sphi 0, %s210
      %s228 = sphi 0, %s228
      %s230 = sphi 0, %s228
      %s231 = sphi 0, %s230
      %s245 = sphi 0, %s231
      %s249 = sphi 0, %s249
      %s251 = sphi 0, %s249
      %s252 = sphi 0, %s251
      %s266 = sphi 0, %s252
      %s274 = sphi 0, %s276
      %s277 = sphi 0, %s274
      %s278 = sphi 0, %s277
      %s294 = sphi 0, %s278
    $region4: #{tpu_custom_call.1} parent=1 // loop_header_branch
      %27 = sbr.rel (%p25) target = $region8
    $region5: #{tpu_custom_call.1} parent=1 // loop_body
      %s29 = ssub.s32 %s24, 1
      %s30 = ssub.s32 %s24, 2
      %s37 = sadd.s32 1, %s32
      %p38 = scmp.ge.s32.totalorder %s37, 4
      %s39 = scalar_select %p38, 0, %s37
      %s40 = sadd.s32 1, %s31
      %s41 = scalar_select %p38, %s40, %s31
      %p42 = scmp.ge.s32.totalorder %s41, 2
      %s43 = scalar_select %p42, 0, %s41
      %s44 = ssub.s32 %s31, %s43
      %s45 = ssub.s32 %s32, %s39
      %s46 = sor.u32 %s44, %s45
      %p47 = scmp.eq.s32.totalorder %s46, 0
      %s49 = sadd.s32 %s48, 1
      %s50 = scalar_select %p47, %s48, %s49
      %p53 = pneg %p47
      %p54 = scmp.eq.s32.totalorder %s24, 7
      %p55 = por %p53, %p54
      %p56 = scmp.ne.s32.totalorder %s48, %s51
      %p57 = scmp.eq.s32.totalorder %s24, 0
      %p58 = por %p56, %p57
      %p59 = scmp.ne.s32.totalorder %s48, %s51
      %p60 = scmp.eq.s32.totalorder %s29, 7
      %p61 = por %p59, %p60
      %p62 = scmp.ne.s32.totalorder %s51, %s52
      %p63 = scmp.eq.s32.totalorder %s29, 0
      %p64 = por %p62, %p63
      %p65 = scmp.ne.s32.totalorder %s51, %s52
      %p66 = scmp.eq.s32.totalorder %s30, 7
      %p67 = por %p65, %p66
      %p69 = scmp.ne.s32.totalorder %s52, %s68
      %p70 = scmp.eq.s32.totalorder %s30, 0
      %p71 = por %p69, %p70
      %s72 = smul.u32 %s32, 4
      %s73 = ssub.s32 %s72, 1
      %p74 = scmp.gt.s32.totalorder %s73, 0
      %s75 = scalar_select %p74, %s73, 0
      %s76 = smul.u32 %s39, 4
      %s77 = ssub.s32 %s76, 1
      %p78 = scmp.gt.s32.totalorder %s77, 0
      %s79 = scalar_select %p78, %s77, 0
      %s80 = ssub.s32 %s31, %s43
      %s81 = ssub.s32 %s75, %s79
      %s82 = sor.u32 %s80, %s81
      %p83 = scmp.eq.s32.totalorder %s82, 0
      %s85 = sadd.s32 %s84, 1
      %s86 = scalar_select %p83, %s84, %s85
      %p89 = pneg %p83
      %p90 = scmp.eq.s32.totalorder %s24, 7
      %p91 = por %p89, %p90
      %p92 = scmp.ne.s32.totalorder %s84, %s87
      %p93 = scmp.eq.s32.totalorder %s24, 0
      %p94 = por %p92, %p93
      %p95 = scmp.ne.s32.totalorder %s84, %s87
      %p96 = scmp.eq.s32.totalorder %s29, 7
      %p97 = por %p95, %p96
      %p98 = scmp.ne.s32.totalorder %s87, %s88
      %p99 = scmp.eq.s32.totalorder %s29, 0
      %p100 = por %p98, %p99
      %p101 = scmp.ne.s32.totalorder %s87, %s88
      %p102 = scmp.eq.s32.totalorder %s30, 7
      %p103 = por %p101, %p102
      %p105 = scmp.ne.s32.totalorder %s88, %s104
      %p106 = scmp.eq.s32.totalorder %s30, 0
      %p107 = por %p105, %p106
      %s108 = smul.u32 %s32, 4
      %s109 = sadd.s32 %s108, 4
      %p110 = scmp.lt.s32.totalorder %s109, 15
      %s111 = scalar_select %p110, %s109, 15
      %s112 = smul.u32 %s39, 4
      %s113 = sadd.s32 %s112, 4
      %p114 = scmp.lt.s32.totalorder %s113, 15
      %s115 = scalar_select %p114, %s113, 15
      %s116 = ssub.s32 %s31, %s43
      %s117 = ssub.s32 %s111, %s115
      %s118 = sor.u32 %s116, %s117
      %p119 = scmp.eq.s32.totalorder %s118, 0
      %s121 = sadd.s32 %s120, 1
      %s122 = scalar_select %p119, %s120, %s121
      %p125 = pneg %p119
      %p126 = scmp.eq.s32.totalorder %s24, 7
      %p127 = por %p125, %p126
      %p128 = scmp.ne.s32.totalorder %s120, %s123
      %p129 = scmp.eq.s32.totalorder %s24, 0
      %p130 = por %p128, %p129
      %p131 = scmp.ne.s32.totalorder %s120, %s123
      %p132 = scmp.eq.s32.totalorder %s29, 7
      %p133 = por %p131, %p132
      %p134 = scmp.ne.s32.totalorder %s123, %s124
      %p135 = scmp.eq.s32.totalorder %s29, 0
      %p136 = por %p134, %p135
      %p137 = scmp.ne.s32.totalorder %s123, %s124
      %p138 = scmp.eq.s32.totalorder %s30, 7
      %p139 = por %p137, %p138
      %p141 = scmp.ne.s32.totalorder %s124, %s140
      %p142 = scmp.eq.s32.totalorder %s30, 0
      %p143 = por %p141, %p142
      %s145 = sadd.s32 %s144, 1
      %p148 = scmp.eq.s32.totalorder %s24, 7
      %p149 = scmp.ne.s32.totalorder %s144, %s146
      %p150 = scmp.eq.s32.totalorder %s24, 0
      %p151 = por %p149, %p150
      %p152 = scmp.ne.s32.totalorder %s144, %s146
      %p153 = scmp.eq.s32.totalorder %s29, 7
      %p154 = por %p152, %p153
      %p155 = scmp.ne.s32.totalorder %s146, %s147
      %p156 = scmp.eq.s32.totalorder %s29, 0
      %p157 = por %p155, %p156
      %p158 = scmp.ne.s32.totalorder %s146, %s147
      %p159 = scmp.eq.s32.totalorder %s30, 7
      %p160 = por %p158, %p159
      %p162 = scmp.ne.s32.totalorder %s147, %s161
      %p163 = scmp.eq.s32.totalorder %s30, 0
      %p164 = por %p162, %p163
      %s166 = sadd.s32 %s165, 1
      %p169 = scmp.eq.s32.totalorder %s24, 7
      %p170 = scmp.ne.s32.totalorder %s165, %s167
      %p171 = scmp.eq.s32.totalorder %s24, 0
      %p172 = por %p170, %p171
      %p173 = scmp.ne.s32.totalorder %s165, %s167
      %p174 = scmp.eq.s32.totalorder %s29, 7
      %p175 = por %p173, %p174
      %p176 = scmp.ne.s32.totalorder %s167, %s168
      %p177 = scmp.eq.s32.totalorder %s29, 0
      %p178 = por %p176, %p177
      %p179 = scmp.ne.s32.totalorder %s167, %s168
      %p180 = scmp.eq.s32.totalorder %s30, 7
      %p181 = por %p179, %p180
      %p183 = scmp.ne.s32.totalorder %s168, %s182
      %p184 = scmp.eq.s32.totalorder %s30, 0
      %p185 = por %p183, %p184
      %s187 = sadd.s32 %s186, 1
      %p190 = scmp.eq.s32.totalorder %s24, 7
      %p191 = scmp.ne.s32.totalorder %s186, %s188
      %p192 = scmp.eq.s32.totalorder %s24, 0
      %p193 = por %p191, %p192
      %p194 = scmp.ne.s32.totalorder %s186, %s188
      %p195 = scmp.eq.s32.totalorder %s29, 7
      %p196 = por %p194, %p195
      %p197 = scmp.ne.s32.totalorder %s188, %s189
      %p198 = scmp.eq.s32.totalorder %s29, 0
      %p199 = por %p197, %p198
      %p200 = scmp.ne.s32.totalorder %s188, %s189
      %p201 = scmp.eq.s32.totalorder %s30, 7
      %p202 = por %p200, %p201
      %p204 = scmp.ne.s32.totalorder %s189, %s203
      %p205 = scmp.eq.s32.totalorder %s30, 0
      %p206 = por %p204, %p205
      %s208 = sadd.s32 %s207, 1
      %p211 = scmp.eq.s32.totalorder %s24, 7
      %p212 = scmp.ne.s32.totalorder %s207, %s209
      %p213 = scmp.eq.s32.totalorder %s24, 0
      %p214 = por %p212, %p213
      %p215 = scmp.ne.s32.totalorder %s207, %s209
      %p216 = scmp.eq.s32.totalorder %s29, 7
      %p217 = por %p215, %p216
      %p218 = scmp.ne.s32.totalorder %s209, %s210
      %p219 = scmp.eq.s32.totalorder %s29, 0
      %p220 = por %p218, %p219
      %p221 = scmp.ne.s32.totalorder %s209, %s210
      %p222 = scmp.eq.s32.totalorder %s30, 7
      %p223 = por %p221, %p222
      %p225 = scmp.ne.s32.totalorder %s210, %s224
      %p226 = scmp.eq.s32.totalorder %s30, 0
      %p227 = por %p225, %p226
      %s229 = sadd.s32 %s228, 1
      %p232 = scmp.eq.s32.totalorder %s24, 7
      %p233 = scmp.ne.s32.totalorder %s228, %s230
      %p234 = scmp.eq.s32.totalorder %s24, 0
      %p235 = por %p233, %p234
      %p236 = scmp.ne.s32.totalorder %s228, %s230
      %p237 = scmp.eq.s32.totalorder %s29, 7
      %p238 = por %p236, %p237
      %p239 = scmp.ne.s32.totalorder %s230, %s231
      %p240 = scmp.eq.s32.totalorder %s29, 0
      %p241 = por %p239, %p240
      %p242 = scmp.ne.s32.totalorder %s230, %s231
      %p243 = scmp.eq.s32.totalorder %s30, 7
      %p244 = por %p242, %p243
      %p246 = scmp.ne.s32.totalorder %s231, %s245
      %p247 = scmp.eq.s32.totalorder %s30, 0
      %p248 = por %p246, %p247
      %s250 = sadd.s32 %s249, 1
      %p253 = scmp.eq.s32.totalorder %s24, 7
      %p254 = scmp.ne.s32.totalorder %s249, %s251
      %p255 = scmp.eq.s32.totalorder %s24, 0
      %p256 = por %p254, %p255
      %p257 = scmp.ne.s32.totalorder %s249, %s251
      %p258 = scmp.eq.s32.totalorder %s29, 7
      %p259 = por %p257, %p258
      %p260 = scmp.ne.s32.totalorder %s251, %s252
      %p261 = scmp.eq.s32.totalorder %s29, 0
      %p262 = por %p260, %p261
      %p263 = scmp.ne.s32.totalorder %s251, %s252
      %p264 = scmp.eq.s32.totalorder %s30, 7
      %p265 = por %p263, %p264
      %p267 = scmp.ne.s32.totalorder %s252, %s266
      %p268 = scmp.eq.s32.totalorder %s30, 0
      %p269 = por %p267, %p268
      %s270 = ssub.s32 %s31, %s43
      %s271 = ssub.s32 %s32, %s39
      %s272 = sor.u32 %s270, %s271
      %p273 = scmp.eq.s32.totalorder %s272, 0
      %s275 = sadd.s32 %s274, 1
      %s276 = scalar_select %p273, %s274, %s275
      %p279 = pneg %p273
      %p280 = scmp.eq.s32.totalorder %s24, 7
      %p281 = por %p279, %p280
      %p282 = scmp.ne.s32.totalorder %s274, %s277
      %p283 = scmp.eq.s32.totalorder %s24, 0
      %p284 = por %p282, %p283
      %p285 = scmp.ne.s32.totalorder %s274, %s277
      %p286 = scmp.eq.s32.totalorder %s29, 7
      %p287 = por %p285, %p286
      %p288 = scmp.ne.s32.totalorder %s277, %s278
      %p289 = scmp.eq.s32.totalorder %s29, 0
      %p290 = por %p288, %p289
      %p291 = scmp.ne.s32.totalorder %s277, %s278
      %p292 = scmp.eq.s32.totalorder %s30, 7
      %p293 = por %p291, %p292
      %p295 = scmp.ne.s32.totalorder %s278, %s294
      %p296 = scmp.eq.s32.totalorder %s30, 0
      %p297 = por %p295, %p296
      %p298 = scmp.le.s32.totalorder 1, %s24
      %p299 = scmp.lt.s32.totalorder %s24, 9
      %p300 = pnand %p298, %p299
      %p301 = pneg %p300
      // Predicated region
      $region9: #{tpu_custom_call.1} parent=5 // pred_check
        _
      $region10: #{tpu_custom_call.1} parent=5 // pred_check_branch
        %303 = sbr.rel (%p300) target = $region12
      $region11: #{tpu_custom_call.1} parent=5 // pred_region
        %s304 = ssub.s32 %s24, 1
        // Predicated region
        $region13: #{tpu_custom_call.1} parent=11 // pred_check
          %p305 = pneg %p157
        $region14: #{tpu_custom_call.1} parent=11 // pred_check_branch
          %307 = sbr.rel (%p305) target = $region16
        $region15: #{tpu_custom_call.1} parent=11 // pred_region
          _
        $region16: #{tpu_custom_call.1} parent=11 // pred_fallthru
          _
        // Predicated region
        $region17: #{tpu_custom_call.1} parent=11 // pred_check
          %p308 = pneg %p178
        $region18: #{tpu_custom_call.1} parent=11 // pred_check_branch
          %310 = sbr.rel (%p308) target = $region20
        $region19: #{tpu_custom_call.1} parent=11 // pred_region
          _
        $region20: #{tpu_custom_call.1} parent=11 // pred_fallthru
          _
        // Predicated region
        $region21: #{tpu_custom_call.1} parent=11 // pred_check
          %p311 = pneg %p199
        $region22: #{tpu_custom_call.1} parent=11 // pred_check_branch
          %313 = sbr.rel (%p311) target = $region24
        $region23: #{tpu_custom_call.1} parent=11 // pred_region
          _
        $region24: #{tpu_custom_call.1} parent=11 // pred_fallthru
          _
        // Predicated region
        $region25: #{tpu_custom_call.1} parent=11 // pred_check
          %p314 = pneg %p220
        $region26: #{tpu_custom_call.1} parent=11 // pred_check_branch
          %316 = sbr.rel (%p314) target = $region28
        $region27: #{tpu_custom_call.1} parent=11 // pred_region
          _
        $region28: #{tpu_custom_call.1} parent=11 // pred_fallthru
          _
        // Predicated region
        $region29: #{tpu_custom_call.1} parent=11 // pred_check
          %p317 = pneg %p241
        $region30: #{tpu_custom_call.1} parent=11 // pred_check_branch
          %319 = sbr.rel (%p317) target = $region32
        $region31: #{tpu_custom_call.1} parent=11 // pred_region
          _
        $region32: #{tpu_custom_call.1} parent=11 // pred_fallthru
          _
        // Predicated region
        $region33: #{tpu_custom_call.1} parent=11 // pred_check
          %p320 = pneg %p262
        $region34: #{tpu_custom_call.1} parent=11 // pred_check_branch
          %322 = sbr.rel (%p320) target = $region36
        $region35: #{tpu_custom_call.1} parent=11 // pred_region
          _
        $region36: #{tpu_custom_call.1} parent=11 // pred_fallthru
          _
      $region12: #{tpu_custom_call.1} parent=5 // pred_fallthru
        _
      %p323 = scmp.lt.s32.totalorder %s24, 8
      // Predicated region
      $region37: #{tpu_custom_call.1} parent=5 // pred_check
        %p324 = pneg %p323
      $region38: #{tpu_custom_call.1} parent=5 // pred_check_branch
        %326 = sbr.rel (%p324) target = $region40
      $region39: #{tpu_custom_call.1} parent=5 // pred_region
        // Predicated region
        $region41: #{tpu_custom_call.1} parent=39 // pred_check
          %p327 = pneg %p58
        $region42: #{tpu_custom_call.1} parent=39 // pred_check_branch
          %329 = sbr.rel (%p327) target = $region44
        $region43: #{tpu_custom_call.1} parent=39 // pred_region
          %s330 = sand.u32 %s48, 1
          %s331 = scalar_lea.sflag [#allocation3], %s330
          %s332 = sand.u32 %s48, 1
          %s333 = smul.addr %s332, 16
          %s334 = scalar_lea.vmem [#allocation2], %s333
          %s335 = smul.u32 4, %s32
          %337 = vsyncadd %s331, 0
          %s338 = smul.addr %s31, 16
          %s339 = sadd.s32 %s335, %s338
          %s340 = smul.addr %s339, 4
          %s341 = scalar_lea.hbm %s0, %s340
          %s342 = sshll.u32 %s341, 4
          %s343 = int_to_ptr.hbm [resolvable:$true] %s342
          %s344 = sshll.u32 %s334, 4
          %s345 = int_to_ptr.vmem [resolvable:$true] %s344
          %350 = dma.hbm_to_vmem [thread:$0]  %s343, 256, %s345, %s331, 64, 64, 4
        $region44: #{tpu_custom_call.1} parent=39 // pred_fallthru
          _
        // Predicated region
        $region45: #{tpu_custom_call.1} parent=39 // pred_check
          %p351 = pneg %p94
        $region46: #{tpu_custom_call.1} parent=39 // pred_check_branch
          %353 = sbr.rel (%p351) target = $region48
        $region47: #{tpu_custom_call.1} parent=39 // pred_region
          %s354 = sand.u32 %s24, 1
          %s355 = scalar_lea.sflag [#allocation6], %s354
          %s356 = sand.u32 %s84, 1
          %s357 = smul.addr %s356, 4
          %s358 = scalar_lea.vmem [#allocation5], %s357
          %s359 = smul.u32 %s32, 4
          %s360 = ssub.s32 %s359, 1
          %p361 = scmp.gt.s32.totalorder %s360, 0
          %s362 = scalar_select %p361, %s360, 0
          %364 = vsyncadd %s355, 0
          %s365 = smul.addr %s31, 16
          %s366 = sadd.s32 %s362, %s365
          %s367 = smul.addr %s366, 4
          %s368 = scalar_lea.hbm %s1, %s367
          %s370 = sshll.u32 %s368, 4
          %s371 = int_to_ptr.hbm [resolvable:$true] %s370
          %s372 = sshll.u32 %s358, 4
          %s373 = int_to_ptr.vmem [resolvable:$true] %s372
          %375 = dma.hbm_to_vmem [thread:$0]  %s371, 64, %s373, %s355
        $region48: #{tpu_custom_call.1} parent=39 // pred_fallthru
          _
        // Predicated region
        $region49: #{tpu_custom_call.1} parent=39 // pred_check
          %p376 = pneg %p130
        $region50: #{tpu_custom_call.1} parent=39 // pred_check_branch
          %378 = sbr.rel (%p376) target = $region52
        $region51: #{tpu_custom_call.1} parent=39 // pred_region
          %s379 = sand.u32 %s24, 1
          %s380 = scalar_lea.sflag [#allocation6], %s379
          %s381 = sand.u32 %s120, 1
          %s382 = smul.addr %s381, 4
          %s383 = scalar_lea.vmem [#allocation7], %s382
          %s384 = smul.u32 %s32, 4
          %s385 = sadd.s32 %s384, 4
          %p386 = scmp.lt.s32.totalorder %s385, 15
          %s387 = scalar_select %p386, %s385, 15
          %389 = vsyncadd %s380, 0
          %s390 = smul.addr %s31, 16
          %s391 = sadd.s32 %s387, %s390
          %s392 = smul.addr %s391, 4
          %s393 = scalar_lea.hbm %s2, %s392
          %s395 = sshll.u32 %s393, 4
          %s396 = int_to_ptr.hbm [resolvable:$true] %s395
          %s397 = sshll.u32 %s383, 4
          %s398 = int_to_ptr.vmem [resolvable:$true] %s397
          %400 = dma.hbm_to_vmem [thread:$0]  %s396, 64, %s398, %s380
        $region52: #{tpu_custom_call.1} parent=39 // pred_fallthru
          _
      $region40: #{tpu_custom_call.1} parent=5 // pred_fallthru
        _
      %p401 = scmp.le.s32.totalorder 1, %s24
      %p402 = scmp.lt.s32.totalorder %s24, 9
      %p403 = pnand %p401, %p402
      %p404 = pneg %p403
      // Predicated region
      $region53: #{tpu_custom_call.1} parent=5 // pred_check
        _
      $region54: #{tpu_custom_call.1} parent=5 // pred_check_branch
        %406 = sbr.rel (%p403) target = $region56
      $region55: #{tpu_custom_call.1} parent=5 // pred_region
        %s407 = ssub.s32 %s24, 1
        %s408 = sand.u32 %s51, 1
        %s409 = scalar_lea.sflag [#allocation3], %s408
        %s410 = sand.u32 %s51, 1
        %s411 = smul.addr %s410, 16
        %s412 = scalar_lea.vmem [#allocation2], %s411
        // Predicated region
        $region57: #{tpu_custom_call.1} parent=55 // pred_check
          %p413 = pneg %p64
        $region58: #{tpu_custom_call.1} parent=55 // pred_check_branch
          %415 = sbr.rel (%p413) target = $region60
        $region59: #{tpu_custom_call.1} parent=55 // pred_region
          %417 = dma.done %s409, 256
        $region60: #{tpu_custom_call.1} parent=55 // pred_fallthru
          _
        %s418 = sand.u32 %s29, 1
        %s419 = scalar_lea.sflag [#allocation6], %s418
        %s420 = sand.u32 %s87, 1
        %s421 = smul.addr %s420, 4
        %s422 = scalar_lea.vmem [#allocation5], %s421
        // Predicated region
        $region61: #{tpu_custom_call.1} parent=55 // pred_check
          %p423 = pneg %p100
        $region62: #{tpu_custom_call.1} parent=55 // pred_check_branch
          %425 = sbr.rel (%p423) target = $region64
        $region63: #{tpu_custom_call.1} parent=55 // pred_region
          %427 = dma.done %s419, 64
        $region64: #{tpu_custom_call.1} parent=55 // pred_fallthru
          _
        %s428 = sand.u32 %s29, 1
        %s429 = scalar_lea.sflag [#allocation6], %s428
        %s430 = sand.u32 %s123, 1
        %s431 = smul.addr %s430, 4
        %s432 = scalar_lea.vmem [#allocation7], %s431
        // Predicated region
        $region65: #{tpu_custom_call.1} parent=55 // pred_check
          %p433 = pneg %p136
        $region66: #{tpu_custom_call.1} parent=55 // pred_check_branch
          %435 = sbr.rel (%p433) target = $region68
        $region67: #{tpu_custom_call.1} parent=55 // pred_region
          %437 = dma.done %s429, 64
        $region68: #{tpu_custom_call.1} parent=55 // pred_fallthru
          _
        %s438 = sand.u32 %s51, 1
        %s439 = scalar_lea.sflag [#allocation3], %s438
        %s440 = sand.u32 %s51, 1
        %s441 = smul.addr %s440, 16
        %s442 = scalar_lea.vmem [#allocation2], %s441
        %p443 = pneg %p64
        %p444 = pneg %p61
        %s445 = sand.u32 %s29, 1
        %s446 = scalar_lea.sflag [#allocation6], %s445
        %s447 = sand.u32 %s87, 1
        %s448 = smul.addr %s447, 4
        %s449 = scalar_lea.vmem [#allocation5], %s448
        %p450 = pneg %p100
        %p451 = pneg %p97
        %s452 = sand.u32 %s29, 1
        %s453 = scalar_lea.sflag [#allocation6], %s452
        %s454 = sand.u32 %s123, 1
        %s455 = smul.addr %s454, 4
        %s456 = scalar_lea.vmem [#allocation7], %s455
        %p457 = pneg %p136
        %p458 = pneg %p133
        %p459 = pneg %p157
        %p460 = pneg %p154
        %p461 = pneg %p178
        %p462 = pneg %p175
        %p463 = pneg %p199
        %p464 = pneg %p196
        %p465 = pneg %p220
        %p466 = pneg %p217
        %p467 = pneg %p241
        %p468 = pneg %p238
        %p469 = pneg %p262
        %p470 = pneg %p259
        %p471 = pneg %p290
        %p472 = pneg %p287
        %s473 = sand.u32 %s277, 1
        %s474 = scalar_lea.sflag [#allocation4], %s473
        %s475 = sand.u32 %s277, 1
        %s476 = smul.addr %s475, 16
        %s477 = scalar_lea.vmem [#allocation8], %s476
        %s478 = smul.u32 4, %s34
        %s479 = smul.u32 %s34, 4
        %s480 = ssub.s32 %s479, 1
        %p481 = scmp.gt.s32.totalorder %s480, 0
        %s482 = scalar_select %p481, %s480, 0
        %s483 = smul.u32 %s34, 4
        %s484 = sadd.s32 %s483, 4
        %p485 = scmp.lt.s32.totalorder %s484, 15
        %s486 = scalar_select %p485, %s484, 15
        %s487 = smul.u32 4, %s34
        %v489 = vld [vmem:[%s412] sm:$0xf]
        %v490 = vld [vmem:[%s412 + $0x4] sm:$0xf]
        %v491 = vld [vmem:[%s412 + $0x8] sm:$0xf]
        %v492 = vld [vmem:[%s412 + $0xc] sm:$0xf]
        %v493 = vld [vmem:[%s3] sm:$0xf]
        %v494 = vld [vmem:[%s3 + $0x4] sm:$0xf]
        %v495 = vld [vmem:[%s3 + $0x8] sm:$0xf]
        %v496 = vld [vmem:[%s3 + $0xc] sm:$0xf]
        %v497 = vld [vmem:[%s4] sm:$0x1]
        %v499 = vperm.slane %v497, 0
        %v505 = vunpack.c.l.b16 %v489
        %v506 = vunpack.c.l.b16 %v490
        %v507 = vunpack.c.l.b16 %v491
        %v508 = vunpack.c.l.b16 %v492
        %v509 = vpack.c.b16 %v506, %v505
        %v510 = vpack.c.b16 %v508, %v507
        %v515 = vunpack.c.l.b16 %v493
        %v516 = vunpack.c.l.b16 %v494
        %v517 = vunpack.c.l.b16 %v495
        %v518 = vunpack.c.l.b16 %v496
        %v519 = vpack.c.b16 %v516, %v515
        %v520 = vpack.c.b16 %v518, %v517
        %vm523 = vcmask 261120
        %v525 = vsel %vm523, %v509, 0
        %v528 = vsel %vm523, %v510, 0
        %530 = vmatpush.bf16.msra.mxu0 0
        %531 = vmatpush.bf16.msra.mxu0 0
        %532 = vmatpush.bf16.msra.mxu0 0
        %533 = vmatpush.bf16.msra.mxu0 0
        %534 = vmatpush.bf16.msra.mxu0 0
        %535 = vmatpush.bf16.msra.mxu0 0
        %536 = vmatpush.bf16.msra.mxu0 %v520
        %537 = vmatpush.bf16.msra.mxu0 %v519
        %538 = vmatmul.bf16.gmra.mxu0 %v525
        %v539 = vpop.f32.mrf.mxu0
        %v540 = vadd.f32 %v499, %v539
        %v541 = vpop.f32.mrf.mxu0
        %v542 = vadd.f32 %v499, %v541
        %543 = vmatmul.bf16.gmra.mxu0 %v528
        %v544 = vpop.f32.mrf.mxu0
        %v545 = vadd.f32 %v499, %v544
        %v546 = vpop.f32.mrf.mxu0
        %v547 = vadd.f32 %v499, %v546
        %548 = vdwg.mxu0
        %v549 = vmax.f32 %v540, 0.0
        %v550 = vmax.f32 %v542, 0.0
        %v551 = vmax.f32 %v545, 0.0
        %v552 = vmax.f32 %v547, 0.0
        %p553 = scmp.gt.s32.totalorder %s34, 0
        %v554 = vld [vmem:[%s422] sm:$0xf]
        %v556 = vsel %vm523, %v554, 0
        %558 = vmatpush.bf16.msra.mxu0 0
        %559 = vmatpush.bf16.msra.mxu0 0
        %560 = vmatpush.bf16.msra.mxu0 0
        %561 = vmatpush.bf16.msra.mxu0 0
        %562 = vmatpush.bf16.msra.mxu0 0
        %563 = vmatpush.bf16.msra.mxu0 0
        %564 = vmatpush.bf16.msra.mxu0 %v520
        %565 = vmatpush.bf16.msra.mxu0 %v519
        %566 = vmatmul.bf16.gmra.mxu0 %v556
        %v567 = vpop.f32.mrf.mxu0
        %v568 = vadd.f32 %v499, %v567
        %v569 = vpop.f32.mrf.mxu0
        %570 = vdwg.mxu0
        %v571 = vmax.f32 %v568, 0.0
        %s572 = scalar_select %p553, 1, 0
        %v573 = vstv %s572
        %vm574 = vcmp.eq.s32.totalorder %v573, 1
        %v575 = vsel %vm574, %v571, 0.0
        %p576 = scmp.lt.s32.totalorder %s34, 3
        %v577 = vld [vmem:[%s432] sm:$0xf]
        %v579 = vsel %vm523, %v577, 0
        %581 = vmatpush.bf16.msra.mxu0 0
        %582 = vmatpush.bf16.msra.mxu0 0
        %583 = vmatpush.bf16.msra.mxu0 0
        %584 = vmatpush.bf16.msra.mxu0 0
        %585 = vmatpush.bf16.msra.mxu0 0
        %586 = vmatpush.bf16.msra.mxu0 0
        %587 = vmatpush.bf16.msra.mxu0 %v520
        %588 = vmatpush.bf16.msra.mxu0 %v519
        %589 = vmatmul.bf16.gmra.mxu0 %v579
        %v590 = vpop.f32.mrf.mxu0
        %v591 = vadd.f32 %v499, %v590
        %v592 = vpop.f32.mrf.mxu0
        %593 = vdwg.mxu0
        %v594 = vmax.f32 %v591, 0.0
        %s595 = scalar_select %p576, 1, 0
        %v596 = vstv %s595
        %vm597 = vcmp.eq.s32.totalorder %v596, 1
        %v598 = vsel %vm597, %v594, 0.0
        %v599 = vlaneseq
        %v600 = vshrl.u32 %v599, 7
        %vm601 = vcmp.eq.s32.totalorder %v600, 0
        %v602 = vrot.slane %v575, 7
        %v603 = vrot.slane %v549, 7
        %v604 = vrot.slane %v550, 7
        %v605 = vrot.slane %v551, 7
        %v606 = vrot.slane %v552, 7
        %v607 = vrot.slane %v598, 7
        %v608 = vsel %vm601, 1, 0
        %vm609 = vcmp.eq.s32.totalorder %v608, 1
        %v610 = vsel %vm609, 0.0, %v602
        %v611 = vsel %vm609, 0.0, %v603
        %v612 = vsel %vm609, 0.0, %v604
        %v613 = vsel %vm609, 0.0, %v605
        %v614 = vsel %vm609, 0.0, %v606
        %v615 = vsel %vm609, 0.0, %v607
        %vm616 = vcmp.eq.s32.totalorder %v600, 7
        %v617 = vrot.slane %v575, 1
        %v618 = vrot.slane %v549, 1
        %v619 = vrot.slane %v550, 1
        %v620 = vrot.slane %v551, 1
        %v621 = vrot.slane %v552, 1
        %v622 = vrot.slane %v598, 1
        %v623 = vsel %vm616, 1, 0
        %vm624 = vcmp.eq.s32.totalorder %v623, 1
        %v625 = vsel %vm624, 0.0, %v617
        %v626 = vsel %vm624, 0.0, %v618
        %v627 = vsel %vm624, 0.0, %v619
        %v628 = vsel %vm624, 0.0, %v620
        %v629 = vsel %vm624, 0.0, %v621
        %v630 = vsel %vm624, 0.0, %v622
        %637 = vrot.lane.b32.xlu0 %v575, 8
        %v638 = vpop.permute.xlu0 %637
        %639 = vrot.lane.b32.xlu0 %v549, 8
        %v640 = vpop.permute.xlu0 %639
        %641 = vrot.lane.b32.xlu0 %v550, 8
        %v642 = vpop.permute.xlu0 %641
        %643 = vrot.lane.b32.xlu0 %v551, 8
        %v644 = vpop.permute.xlu0 %643
        %645 = vrot.lane.b32.xlu0 %v552, 8
        %v646 = vpop.permute.xlu0 %645
        %647 = vrot.lane.b32.xlu0 %v598, 8
        %v648 = vpop.permute.xlu0 %647
        %661 = vrot.lane.b32.xlu0 %v625, 16
        %v662 = vpop.permute.xlu0 %661
        %663 = vrot.lane.b32.xlu0 %v626, 16
        %v664 = vpop.permute.xlu0 %663
        %665 = vrot.lane.b32.xlu0 %v627, 16
        %v666 = vpop.permute.xlu0 %665
        %667 = vrot.lane.b32.xlu0 %v628, 16
        %v668 = vpop.permute.xlu0 %667
        %669 = vrot.lane.b32.xlu0 %v629, 16
        %v670 = vpop.permute.xlu0 %669
        %671 = vrot.lane.b32.xlu0 %v630, 16
        %v672 = vpop.permute.xlu0 %671
        %vm679 = vcmask 64512
        %v680 = vsel %vm679, %v610, %v638
        %v681 = vsel %vm679, %v611, %v640
        %v682 = vsel %vm679, %v612, %v642
        %v683 = vsel %vm679, %v613, %v644
        %v684 = vsel %vm679, %v614, %v646
        %v685 = vsel %vm679, %v615, %v648
        %vm686 = vcmask 130048
        %v687 = vsel %vm686, %v680, %v662
        %v688 = vsel %vm686, %v681, %v664
        %v689 = vsel %vm686, %v682, %v666
        %v690 = vsel %vm686, %v683, %v668
        %v691 = vsel %vm686, %v684, %v670
        %v692 = vsel %vm686, %v685, %v672
        %v693 = vpack.c.bf16 %v687, %v687
        %v694 = vpack.c.bf16 %v688, %v688
        %v695 = vpack.c.bf16 %v689, %v689
        %v696 = vpack.c.bf16 %v690, %v690
        %v697 = vpack.c.bf16 %v691, %v691
        %v698 = vpack.c.bf16 %v692, %v692
        %v703 = vunpack.c.l.b16 %v694
        %v704 = vunpack.c.l.b16 %v695
        %v705 = vunpack.c.l.b16 %v696
        %v706 = vunpack.c.l.b16 %v697
        %v707 = vpack.c.b16 %v703, %v703
        %v708 = vpack.c.b16 %v704, %v704
        %v709 = vpack.c.b16 %v705, %v705
        %v710 = vpack.c.b16 %v706, %v706
        %711 = vrot.lane.b32.xlu0 %v707, 24
        %v712 = vpop.permute.xlu0 %711
        %713 = vrot.lane.b32.xlu0 %v708, 24
        %v714 = vpop.permute.xlu0 %713
        %715 = vrot.lane.b32.xlu0 %v709, 24
        %v716 = vpop.permute.xlu0 %715
        %717 = vrot.lane.b32.xlu0 %v710, 24
        %v718 = vpop.permute.xlu0 %717
        %v720 = vunpack.c.l.b16 %v698
        %v721 = vpack.c.b16 %v720, %v720
        %722 = vrot.lane.b32.xlu0 %v708, 48
        %v723 = vpop.permute.xlu0 %722
        %724 = vrot.lane.b32.xlu0 %v709, 48
        %v725 = vpop.permute.xlu0 %724
        %726 = vrot.lane.b32.xlu0 %v710, 48
        %v727 = vpop.permute.xlu0 %726
        %728 = vrot.lane.b32.xlu0 %v721, 48
        %v729 = vpop.permute.xlu0 %728
        %vm730 = vcmask 195584
        %v733 = vsel %vm730, %v693, %v712
        %v736 = vsel %vm730, %v694, %v714
        %v739 = vsel %vm730, %v695, %v716
        %v742 = vsel %vm730, %v696, %v718
        %vm743 = vcmask 392192
        %v745 = vsel %vm743, %v733, %v723
        %v747 = vsel %vm743, %v736, %v725
        %v749 = vsel %vm743, %v739, %v727
        %v751 = vsel %vm743, %v742, %v729
        %v752 = vld [vmem:[%s5] sm:$0xf]
        %v753 = vld [vmem:[%s5 + $0x4] sm:$0xf]
        %v754 = vld [vmem:[%s5 + $0x8] sm:$0xf]
        %v755 = vld [vmem:[%s5 + $0xc] sm:$0xf]
        %v756 = vld [vmem:[%s5 + $0x10] sm:$0xf]
        %v757 = vld [vmem:[%s5 + $0x14] sm:$0xf]
        %v758 = vld [vmem:[%s5 + $0x18] sm:$0xf]
        %v759 = vld [vmem:[%s5 + $0x1c] sm:$0xf]
        %v760 = vld [vmem:[%s5 + $0x20] sm:$0xf]
        %v761 = vld [vmem:[%s6] sm:$0x1]
        %v763 = vperm.slane %v761, 0
        %v769 = vunpack.c.l.b16 %v745
        %v770 = vunpack.c.l.b16 %v747
        %v771 = vunpack.c.l.b16 %v749
        %v772 = vunpack.c.l.b16 %v751
        %v773 = vpack.c.b16 %v770, %v769
        %v774 = vpack.c.b16 %v772, %v771
        %v784 = vunpack.c.l.b16 %v752
        %v785 = vunpack.c.l.b16 %v753
        %v786 = vunpack.c.l.b16 %v754
        %v787 = vunpack.c.l.b16 %v755
        %v788 = vunpack.c.l.b16 %v756
        %v789 = vunpack.c.l.b16 %v757
        %v790 = vunpack.c.l.b16 %v758
        %v791 = vunpack.c.l.b16 %v759
        %v792 = vunpack.c.l.b16 %v760
        %v793 = vpack.c.b16 %v785, %v784
        %v794 = vpack.c.b16 %v787, %v786
        %v795 = vpack.c.b16 %v789, %v788
        %v796 = vpack.c.b16 %v791, %v790
        %v797 = vpack.c.b16 %v792, %v792
        %vm802 = vcmask 588800
        %v804 = vsel %vm802, %v773, 0
        %v807 = vsel %vm802, %v774, 0
        %vm809 = vcmask 1043456
        %v811 = vsel %vm809, %v797, 0
        %813 = vmatpush.bf16.msra.mxu0 0
        %814 = vmatpush.bf16.msra.mxu0 0
        %815 = vmatpush.bf16.msra.mxu0 0
        %816 = vmatpush.bf16.msra.mxu0 %v811
        %817 = vmatpush.bf16.msra.mxu0 %v796
        %818 = vmatpush.bf16.msra.mxu0 %v795
        %819 = vmatpush.bf16.msra.mxu0 %v794
        %820 = vmatpush.bf16.msra.mxu0 %v793
        %821 = vmatmul.bf16.gmra.mxu0 %v804
        %v822 = vpop.f32.mrf.mxu0
        %v823 = vadd.f32 %v763, %v822
        %v824 = vpop.f32.mrf.mxu0
        %v825 = vadd.f32 %v763, %v824
        %826 = vmatmul.bf16.gmra.mxu0 %v807
        %v827 = vpop.f32.mrf.mxu0
        %v828 = vadd.f32 %v763, %v827
        %v829 = vpop.f32.mrf.mxu0
        %v830 = vadd.f32 %v763, %v829
        %831 = vdwg.mxu0
        %v832 = vmax.f32 %v823, 0.0
        %v833 = vmax.f32 %v825, 0.0
        %v834 = vmax.f32 %v828, 0.0
        %v835 = vmax.f32 %v830, 0.0
        %v836 = vpack.c.bf16 %v833, %v832
        %v837 = vpack.c.bf16 %v835, %v834
        %v838 = vld [vmem:[%s7] sm:$0xf]
        %v839 = vld [vmem:[%s8] sm:$0x1]
        %v841 = vperm.slane %v839, 0
        %v844 = vsel %vm679, %v836, 0
        %v847 = vsel %vm679, %v837, 0
        %v850 = vsel %vm809, %v838, 0
        %852 = vmatpush.bf16.msra.mxu0 0
        %853 = vmatpush.bf16.msra.mxu0 0
        %854 = vmatpush.bf16.msra.mxu0 0
        %855 = vmatpush.bf16.msra.mxu0 0
        %856 = vmatpush.bf16.msra.mxu0 0
        %857 = vmatpush.bf16.msra.mxu0 0
        %858 = vmatpush.bf16.msra.mxu0 0
        %859 = vmatpush.bf16.msra.mxu0 %v850
        %860 = vmatmul.bf16.gmra.mxu0 %v844
        %v861 = vpop.f32.mrf.mxu0
        %v862 = vadd.f32 %v841, %v861
        %v863 = vpop.f32.mrf.mxu0
        %v864 = vadd.f32 %v841, %v863
        %865 = vmatmul.bf16.gmra.mxu0 %v847
        %v866 = vpop.f32.mrf.mxu0
        %v867 = vadd.f32 %v841, %v866
        %v868 = vpop.f32.mrf.mxu0
        %v869 = vadd.f32 %v841, %v868
        %870 = vdwg.mxu0
        %v871 = vunpack.c.l.bf16 %v489
        %v872 = vunpack.c.l.bf16 %v490
        %v873 = vunpack.c.l.bf16 %v491
        %v874 = vunpack.c.l.bf16 %v492
        %v875 = vadd.f32 %v862, %v871
        %v876 = vadd.f32 %v864, %v872
        %v877 = vadd.f32 %v867, %v873
        %v878 = vadd.f32 %v869, %v874
        %v879 = vmax.f32 %v875, 0.0
        %v880 = vmax.f32 %v876, 0.0
        %v881 = vmax.f32 %v877, 0.0
        %v882 = vmax.f32 %v878, 0.0
        %v883 = vpack.c.bf16 %v879, %v879
        %v884 = vpack.c.bf16 %v880, %v880
        %v885 = vpack.c.bf16 %v881, %v881
        %v886 = vpack.c.bf16 %v882, %v882
        %vm887 = vcmask 257024
        %888 = vst.msk [vmem:[%s477] sm:$0xf] %vm887, %v883
        %889 = vst.msk [vmem:[%s477 + $0x4] sm:$0xf] %vm887, %v884
        %890 = vst.msk [vmem:[%s477 + $0x8] sm:$0xf] %vm887, %v885
        %891 = vst.msk [vmem:[%s477 + $0xc] sm:$0xf] %vm887, %v886
        %s892 = sand.u32 %s277, 1
        %s893 = scalar_lea.sflag [#allocation4], %s892
        %s894 = sand.u32 %s277, 1
        %s895 = smul.addr %s894, 16
        %s896 = scalar_lea.vmem [#allocation8], %s895
        // Predicated region
        $region69: #{tpu_custom_call.1} parent=55 // pred_check
          %p897 = pneg %p287
        $region70: #{tpu_custom_call.1} parent=55 // pred_check_branch
          %899 = sbr.rel (%p897) target = $region72
        $region71: #{tpu_custom_call.1} parent=55 // pred_region
          %s900 = smul.u32 4, %s34
          %902 = vsyncadd %s893, 0
          %s903 = smul.addr %s33, 16
          %s904 = sadd.s32 %s900, %s903
          %s905 = smul.addr %s904, 4
          %s906 = scalar_lea.hbm %s9, %s905
          %s907 = sshll.u32 %s896, 4
          %s908 = int_to_ptr.vmem [resolvable:$true] %s907
          %s909 = sshll.u32 %s906, 4
          %s910 = int_to_ptr.hbm [resolvable:$true] %s909
          %915 = dma.vmem_to_hbm [thread:$0]  %s908, 256, %s910, %s893, 64, 64, 4
        $region72: #{tpu_custom_call.1} parent=55 // pred_fallthru
          _
      $region56: #{tpu_custom_call.1} parent=5 // pred_fallthru
        _
      %p916 = scmp.le.s32.totalorder 2, %s24
      // Predicated region
      $region73: #{tpu_custom_call.1} parent=5 // pred_check
        %p917 = pneg %p916
      $region74: #{tpu_custom_call.1} parent=5 // pred_check_branch
        %919 = sbr.rel (%p917) target = $region76
      $region75: #{tpu_custom_call.1} parent=5 // pred_region
        %s920 = ssub.s32 %s24, 2
        // Predicated region
        $region77: #{tpu_custom_call.1} parent=75 // pred_check
          %p921 = pneg %p293
        $region78: #{tpu_custom_call.1} parent=75 // pred_check_branch
          %923 = sbr.rel (%p921) target = $region80
        $region79: #{tpu_custom_call.1} parent=75 // pred_region
          %s924 = sand.u32 %s278, 1
          %s925 = scalar_lea.sflag [#allocation4], %s924
          %s926 = sand.u32 %s278, 1
          %s927 = smul.addr %s926, 16
          %s928 = scalar_lea.vmem [#allocation8], %s927
          %930 = dma.done %s925, 256
        $region80: #{tpu_custom_call.1} parent=75 // pred_fallthru
          _
      $region76: #{tpu_custom_call.1} parent=5 // pred_fallthru
        _
    $region6: #{tpu_custom_call.1} parent=1 // loop_footer
      %s28 = sadd.s32 1, %s24
    $region7: #{tpu_custom_call.1} parent=1 // loop_footer_branch
      %23 = sbr.rel target = $region3
    $region8: #{tpu_custom_call.1} parent=1 // loop_exit
      _
    %931 = vsyncpa [#allocation3], 1
    %s932 = scalar_lea.sflag [#allocation3], 1
    %933 = vsyncpa %s932, 1
    %934 = vsyncpa [#allocation6], 1
    %s935 = scalar_lea.sflag [#allocation6], 1
    %936 = vsyncpa %s935, 1
    %937 = vsyncpa [#allocation4], 1
    %s938 = scalar_lea.sflag [#allocation4], 1
    %939 = vsyncpa %s938, 1

</llo_original>
